<compile_context>
chip_gen: v6e
topology: v6e:2x2x1
jax: 0.10.0
libtpu: 0.0.40
codegen_flags: <defaults>
</compile_context>

<pallas_src>
import functools

import jax
import jax.numpy as jnp
from jax.experimental import pallas as pl
from jax.experimental.pallas import tpu as pltpu


# ----------------------------- Pallas kernel --------------------------------

def swag_fused_kernel(x_ref, w_ref, b_ref, o_ref):
    # x_ref: (B_pad, D_pad)  w_ref: (D_pad, tn)  b_ref: (1, tn)  o_ref: (B_pad, tn)
    # One MXU matmul per grid step; weights already in (K, N) orientation so no
    # transpose / relayout is emitted.  f32 accumulation, f32 epilogue.
    y = jnp.dot(x_ref[...], w_ref[...], preferred_element_type=jnp.float32)
    o_ref[...] = (y + b_ref[...]).astype(o_ref.dtype)


def _round_up(n, m):
    return ((n + m - 1) // m) * m


def swag_forward(x, w_samples, b_samples):
    """Eval-mode SWAG forward: run x through every sampled model, cat on dim=1.

    Implemented as a single fused matmul  x @ W_all + b_all  with
    W_all[d, s*O + o] = w_samples[s, o, d], which equals
    torch.cat([x @ W_s.T + b_s for s], dim=1).
    """
    S, O, D = w_samples.shape
    B = x.shape[0]
    N = S * O

    # Fold all sampled linears into one (D, S*O) weight slab (sample-major
    # output columns => matches torch.cat(dim=1) chunk order).
    w_all = jnp.transpose(w_samples, (2, 0, 1)).reshape(D, N)
    b_all = b_samples.reshape(1, N)

    # Pad to vreg granularity: 8 sublanes (batch), 128 lanes (D and S*O) so the
    # kernel issues unmasked full-lane loads/stores.
    B_pad = _round_up(max(B, 8), 8)
    D_pad = _round_up(D, 128)
    N_pad = _round_up(N, 128)

    # TODO(synk): for realistic layer sizes cast x / w_all to bfloat16 here
    # (keep preferred_element_type=f32 in the kernel) to hit MXU bf16 peak.
    x_p = jnp.zeros((B_pad, D_pad), x.dtype).at[:B, :D].set(x)
    w_p = jnp.zeros((D_pad, N_pad), w_all.dtype).at[:D, :N].set(w_all)
    b_p = jnp.zeros((1, N_pad), b_all.dtype).at[:, :N].set(b_all)

    # Output-column tile.  At toy sizes this is the whole (padded) output in one
    # step; at real sizes it tiles N in 512/256/128-lane chunks (keeps the
    # per-step weight block + double buffer small enough for v7x's 64 MiB VMEM).
    if N_pad <= 1024:
        tn = N_pad
    elif N_pad % 512 == 0:
        tn = 512
    elif N_pad % 256 == 0:
        tn = 256
    else:
        tn = 128
    grid = (N_pad // tn,)

    out = pl.pallas_call(
        swag_fused_kernel,
        out_shape=jax.ShapeDtypeStruct((B_pad, N_pad), x.dtype),
        grid_spec=pltpu.PrefetchScalarGridSpec(
            num_scalar_prefetch=0,
            grid=grid,
            in_specs=[
                pl.BlockSpec((B_pad, D_pad), lambda j: (0, 0)),  # x resident
                pl.BlockSpec((D_pad, tn), lambda j: (0, j)),     # weight col-tile
                pl.BlockSpec((1, tn), lambda j: (0, j)),         # bias col-tile
            ],
            out_specs=pl.BlockSpec((B_pad, tn), lambda j: (0, j)),
        ),
        compiler_params=pltpu.CompilerParams(
            dimension_semantics=("parallel",)),
    )(x_p, w_p, b_p)

    # Strip padding; layout already matches torch.cat([...], dim=1).
    return out[:B, :N]


# --------------------- SWAG state / sampling (plain-JAX glue) ----------------

def build_swag_state(key, n_rank, n_params):
    """Simulate `update_swag` being called n_rank times with synthetic snapshots."""
    keys = jax.random.split(key, n_rank)
    buffer = []
    mean = None
    second = None
    for i in range(n_rank):
        params = 0.02 * jax.random.normal(keys[i], (n_params,), dtype=jnp.float32)
        buffer.append(params)
        if i == 0:
            mean = params
            second = params ** 2
        else:
            mean = i / (i + 1) * mean + params / (i + 1)
            second = i / (i + 1) * second + params ** 2 / (i + 1)
    return mean, second, jnp.stack(buffer)  # buffer holds the last n_rank snapshots


def sample_swag_params(key, mean, second_mom, buffer, n_samples, n_rank,
                       min_var=1e-30):
    """Vectorized version of SWAG._sample_params (sample_masks=None branch)."""
    # TODO(synk): sample_masks branch (per-mask additive deviations) not implemented.
    P = mean.shape[0]
    K = buffer.shape[0]
    cov_diag = jnp.clip(second_mom - mean ** 2, min_var, None)
    deviations = buffer - mean[None, :]                      # (K, P)
    k1, k2 = jax.random.split(key)
    z1 = jax.random.normal(k1, (n_samples, P), dtype=jnp.float32)
    z2 = jax.random.normal(k2, (n_samples, K), dtype=jnp.float32)
    sampled_dev = (1.0 / jnp.sqrt(2.0)) * jnp.sqrt(cov_diag)[None, :] * z1 \
        + (1.0 / jnp.sqrt(2.0 * (n_rank - 1))) * (z2 @ deviations)
    return mean[None, :] + sampled_dev                       # (n_samples, P)


# ---------------------------------- main -------------------------------------

if __name__ == "__main__":
    # TODO(synk): update_bn has no equivalent here (base model has no BatchNorm).
    B, D, O = 2, 32, 8          # batch, in_features, out_features
    n_rank, n_samples = 10, 10
    n_params = O * D + O        # flattened [weight (O,D), bias (O,)]

    key = jax.random.PRNGKey(0)
    k_x, k_buf, k_samp = jax.random.split(key, 3)

    x = jax.random.normal(k_x, (B, D), dtype=jnp.float32)

    # Deterministic SWAG posterior state + n_samples parameter draws.
    mean, second_mom, buffer = build_swag_state(k_buf, n_rank, n_params)
    flat_params = sample_swag_params(k_samp, mean, second_mom, buffer,
                                     n_samples, n_rank)       # (S, P)

    # _set_params: unflatten in named_parameters() order (weight, then bias).
    w_samples = flat_params[:, :O * D].reshape(n_samples, O, D)
    b_samples = flat_params[:, O * D:].reshape(n_samples, O)

    out = swag_forward(x, w_samples, b_samples)
    out = jax.block_until_ready(out)
    assert out.shape == (B, n_samples * O), out.shape

    # Cross-check against plain-JAX reference of the same forward semantics.
    ref = jnp.concatenate(
        [x @ w_samples[s].T + b_samples[s] for s in range(n_samples)], axis=1)
    assert jnp.allclose(out, ref, atol=1e-5, rtol=1e-5)

    print("KERNEL_OK")
</pallas_src>

<mosaic_0001>
module attributes {stable_mosaic.version = 11 : i64} {
  func.func @swag_fused_kernel(%arg0: i32, %arg1: memref<8x128xf32, #tpu.memory_space<vmem>>, %arg2: memref<128x128xf32, #tpu.memory_space<vmem>>, %arg3: memref<1x128xf32, #tpu.memory_space<vmem>>, %arg4: memref<8x128xf32, #tpu.memory_space<vmem>>) attributes {dimension_semantics = [#tpu.dimension_semantics<parallel>], iteration_bounds = array<i64: 1>, scalar_prefetch = 0 : i64, scratch_operands = 0 : i64, tpu.core_type = #tpu.core_type<tc>, window_params = [{pipeline_mode = #tpu.pipeline_mode<synchronous>, transform_indices = @transform_0, window_bounds = array<i64: 8, 128>}, {transform_indices = @transform_1, window_bounds = array<i64: 128, 128>}, {transform_indices = @transform_2, window_bounds = array<i64: 1, 128>}, {transform_indices = @transform_3, window_bounds = array<i64: 8, 128>}]} {
    %c0 = arith.constant 0 : index
    %c0_0 = arith.constant 0 : index
    %0 = vector.load %arg1[%c0, %c0_0] : memref<8x128xf32, #tpu.memory_space<vmem>>, vector<8x128xf32>
    %c0_1 = arith.constant 0 : index
    %c0_2 = arith.constant 0 : index
    %1 = vector.load %arg2[%c0_1, %c0_2] : memref<128x128xf32, #tpu.memory_space<vmem>>, vector<128x128xf32>
    %cst = arith.constant dense<0.000000e+00> : vector<8x128xf32>
    %2 = tpu.matmul %0, %1, %cst {dimension_numbers = #tpu.dot_dimension_numbers<[1], [0], [0], [1], [0, 0, 1, 1], [], []>} : vector<8x128xf32>, vector<128x128xf32>, vector<8x128xf32> -> vector<8x128xf32>
    %c0_3 = arith.constant 0 : index
    %c0_4 = arith.constant 0 : index
    %3 = vector.load %arg3[%c0_3, %c0_4] : memref<1x128xf32, #tpu.memory_space<vmem>>, vector<1x128xf32>
    %4 = vector.broadcast %3 : vector<1x128xf32> to vector<8x128xf32>
    %5 = arith.addf %2, %4 : vector<8x128xf32>
    %c0_5 = arith.constant 0 : index
    %c0_6 = arith.constant 0 : index
    %6 = vector.load %arg4[%c0_5, %c0_6] : memref<8x128xf32, #tpu.memory_space<vmem>>, vector<8x128xf32>
    tpu.vector_store %arg4[%c0_5, %c0_6], %5 {strides = array<i32>} : memref<8x128xf32, #tpu.memory_space<vmem>>, vector<8x128xf32>,
    return
  }
  func.func @transform_0(%arg0: i32) -> (i32, i32) {
    %c0_i32 = arith.constant 0 : i32
    %c0_i32_0 = arith.constant 0 : i32
    %c0_i32_1 = arith.constant 0 : i32
    return %c0_i32, %c0_i32_0 : i32, i32
  }
  func.func @transform_1(%arg0: i32) -> (i32, i32) {
    %c0_i32 = arith.constant 0 : i32
    %c0_i32_0 = arith.constant 0 : i32
    return %c0_i32, %arg0 : i32, i32
  }
  func.func @transform_2(%arg0: i32) -> (i32, i32) {
    %c0_i32 = arith.constant 0 : i32
    %c0_i32_0 = arith.constant 0 : i32
    return %c0_i32, %arg0 : i32, i32
  }
  func.func @transform_3(%arg0: i32) -> (i32, i32) {
    %c0_i32 = arith.constant 0 : i32
    %c0_i32_0 = arith.constant 0 : i32
    return %c0_i32, %arg0 : i32, i32
  }
}

</mosaic_0001>

<llo_original>
// kernel: tpu_custom_call.1
$region0: #{tpu_custom_call.1}
  #allocation0 [shape = 'u32[]', space=smem, size = 0x4, offset = 0x4, fixed_abs, tag = 'smem constant byte address 0x4 - core index']
  #allocation1 [shape = 'u32[144,128]{1,0:T(1,128)}', space=vmem, size = 0x12000, scoped, tag = 'internal scratch']
  %s0 = inlined_call_operand.hbm [shape: f32[8,128], index: 0, kind: input, shape index: {}]
  %s1 = inlined_call_operand.hbm [shape: f32[128,128], index: 1, kind: input, shape index: {}]
  %s2 = inlined_call_operand.vmem [shape: f32[1,128], index: 2, kind: input, shape index: {}]
  %s3 = inlined_call_operand.hbm [shape: f32[8,128], index: 3, kind: output, shape index: {}]
  %s4 = sld [smem:[#allocation0]]
  $region30: #{tpu_custom_call.1} parent=0
    _
  %s6 = ssub.s32 1, %s4
  %s7 = scalar_select 0, %s6, %s4
  $region1: #{tpu_custom_call.1} parent=0
    #allocation2 [shape = 'u8[4096]{0}', space=vmem, size = 0x1000, scoped, tag = 'input window, operand 0, single buffered']
    #allocation3 [shape = 's32[1]{0}', space=sflag, size = 0x4, scoped, tag = 'scoped memory for tpu_custom_call.1']
    #allocation4 [shape = 's32[1]{0}', space=sflag, size = 0x4, scoped, tag = 'scoped memory for tpu_custom_call.1']
    #allocation5 [shape = 'u8[65536]{0}', space=vmem, size = 0x10000, scoped, tag = 'input window, operand 1, single buffered']
    #allocation6 [shape = 's32[1]{0}', space=sflag, size = 0x4, scoped, tag = 'scoped memory for tpu_custom_call.1']
    #allocation7 [shape = 'u8[4096]{0}', space=vmem, size = 0x1000, scoped, tag = 'output window, operand 0, single buffered']
    %8 = vsyncpa [#allocation3], 0
    %9 = vsyncpa [#allocation6], 0
    %10 = vsyncpa [#allocation4], 0
    // Predicated region
    $region2: #{tpu_custom_call.1} parent=1 // pred_check
      _
    $region3: #{tpu_custom_call.1} parent=1 // pred_check_branch
      %12 = sbr.rel (0) target = $region5
    $region4: #{tpu_custom_call.1} parent=1 // pred_region
      %s14 = ssub.s32 128, 128
      %15 = vsyncadd [#allocation3], %s14
      %s17 = sshll.u32 [#allocation2], 4
      %s18 = int_to_ptr.vmem [resolvable:$true] %s17
      %20 = dma.hbm_to_vmem [thread:$0]  %s0, 128, %s18, [#allocation3]
    $region5: #{tpu_custom_call.1} parent=1 // pred_fallthru
      _
    // Predicated region
    $region6: #{tpu_custom_call.1} parent=1 // pred_check
      _
    $region7: #{tpu_custom_call.1} parent=1 // pred_check_branch
      %22 = sbr.rel (0) target = $region9
    $region8: #{tpu_custom_call.1} parent=1 // pred_region
      %s24 = ssub.s32 2048, 2048
      %25 = vsyncadd [#allocation6], %s24
      %s26 = sshll.u32 [#allocation5], 4
      %s27 = int_to_ptr.vmem [resolvable:$true] %s26
      %32 = dma.hbm_to_vmem [thread:$0]  %s1, 2048, %s27, [#allocation6], 128, 128, 8
    $region9: #{tpu_custom_call.1} parent=1 // pred_fallthru
      _
    // Predicated region
    $region10: #{tpu_custom_call.1} parent=1 // pred_check
      _
    $region11: #{tpu_custom_call.1} parent=1 // pred_check_branch
      %34 = sbr.rel (0) target = $region13
    $region12: #{tpu_custom_call.1} parent=1 // pred_region
      _
    $region13: #{tpu_custom_call.1} parent=1 // pred_fallthru
      _
    // Predicated region
    $region14: #{tpu_custom_call.1} parent=1 // pred_check
      _
    $region15: #{tpu_custom_call.1} parent=1 // pred_check_branch
      %36 = sbr.rel (0) target = $region17
    $region16: #{tpu_custom_call.1} parent=1 // pred_region
      %37 = dma.done [#allocation3], 128
    $region17: #{tpu_custom_call.1} parent=1 // pred_fallthru
      _
    // Predicated region
    $region18: #{tpu_custom_call.1} parent=1 // pred_check
      _
    $region19: #{tpu_custom_call.1} parent=1 // pred_check_branch
      %39 = sbr.rel (0) target = $region21
    $region20: #{tpu_custom_call.1} parent=1 // pred_region
      %40 = dma.done [#allocation6], 2048
    $region21: #{tpu_custom_call.1} parent=1 // pred_fallthru
      _
    %v41 = vld [vmem:[#allocation2] sm:$0xff]
    %v42 = vld [vmem:[#allocation5] sm:$0xff]
    %v43 = vld [vmem:[#allocation5 + $0x8] sm:$0xff]
    %v44 = vld [vmem:[#allocation5 + $0x10] sm:$0xff]
    %v45 = vld [vmem:[#allocation5 + $0x18] sm:$0xff]
    %v46 = vld [vmem:[#allocation5 + $0x20] sm:$0xff]
    %v47 = vld [vmem:[#allocation5 + $0x28] sm:$0xff]
    %v48 = vld [vmem:[#allocation5 + $0x30] sm:$0xff]
    %v49 = vld [vmem:[#allocation5 + $0x38] sm:$0xff]
    %v50 = vld [vmem:[#allocation5 + $0x40] sm:$0xff]
    %v51 = vld [vmem:[#allocation5 + $0x48] sm:$0xff]
    %v52 = vld [vmem:[#allocation5 + $0x50] sm:$0xff]
    %v53 = vld [vmem:[#allocation5 + $0x58] sm:$0xff]
    %v54 = vld [vmem:[#allocation5 + $0x60] sm:$0xff]
    %v55 = vld [vmem:[#allocation5 + $0x68] sm:$0xff]
    %v56 = vld [vmem:[#allocation5 + $0x70] sm:$0xff]
    %v57 = vld [vmem:[#allocation5 + $0x78] sm:$0xff]
    %v58 = vld [vmem:[%s2] sm:$0x1]
    %v60 = vlaneseq
    %v61 = vshrl.u32 %v60, 7
    %v62 = vsub.s32 0, %v61
    %v63 = vrot.slane %v58, %v62
    %65 = vmatprep.subr.mxu0 0.0
    %66 = vmatpush1.msra.mxu0 %v57
    %67 = vmatprep.subr.mxu0 0.0
    %68 = vmatpush1.msra.mxu0 %v56
    %69 = vmatprep.subr.mxu0 0.0
    %70 = vmatpush1.msra.mxu0 %v55
    %71 = vmatprep.subr.mxu0 0.0
    %72 = vmatpush1.msra.mxu0 %v54
    %73 = vmatprep.subr.mxu0 0.0
    %74 = vmatpush1.msra.mxu0 %v53
    %75 = vmatprep.subr.mxu0 0.0
    %76 = vmatpush1.msra.mxu0 %v52
    %77 = vmatprep.subr.mxu0 0.0
    %78 = vmatpush1.msra.mxu0 %v51
    %79 = vmatprep.subr.mxu0 0.0
    %80 = vmatpush1.msra.mxu0 %v50
    %81 = vmatprep.subr.mxu0 0.0
    %82 = vmatpush1.msra.mxu0 %v49
    %83 = vmatprep.subr.mxu0 0.0
    %84 = vmatpush1.msra.mxu0 %v48
    %85 = vmatprep.subr.mxu0 0.0
    %86 = vmatpush1.msra.mxu0 %v47
    %87 = vmatprep.subr.mxu0 0.0
    %88 = vmatpush1.msra.mxu0 %v46
    %89 = vmatprep.subr.mxu0 0.0
    %90 = vmatpush1.msra.mxu0 %v45
    %91 = vmatprep.subr.mxu0 0.0
    %92 = vmatpush1.msra.mxu0 %v44
    %93 = vmatprep.subr.mxu0 0.0
    %94 = vmatpush1.msra.mxu0 %v43
    %95 = vmatprep.subr.mxu0 0.0
    %96 = vmatpush1.msra.mxu0 %v42
    %97 = vmatprep.subr.mxu0 0.0
    %98 = vmatpush2.msra.mxu0 0.0
    %99 = vmatprep.subr.mxu0 0.0
    %100 = vmatpush2.msra.mxu0 0.0
    %101 = vmatprep.subr.mxu0 0.0
    %102 = vmatpush2.msra.mxu0 0.0
    %103 = vmatprep.subr.mxu0 0.0
    %104 = vmatpush2.msra.mxu0 0.0
    %105 = vmatprep.subr.mxu0 0.0
    %106 = vmatpush2.msra.mxu0 0.0
    %107 = vmatprep.subr.mxu0 0.0
    %108 = vmatpush2.msra.mxu0 0.0
    %109 = vmatprep.subr.mxu0 0.0
    %110 = vmatpush2.msra.mxu0 0.0
    %111 = vmatprep.subr.mxu0 0.0
    %112 = vmatpush2.msra.mxu0 0.0
    %113 = vmatprep.subr.mxu0 0.0
    %114 = vmatpush2.msra.mxu0 0.0
    %115 = vmatprep.subr.mxu0 0.0
    %116 = vmatpush2.msra.mxu0 0.0
    %117 = vmatprep.subr.mxu0 0.0
    %118 = vmatpush2.msra.mxu0 0.0
    %119 = vmatprep.subr.mxu0 0.0
    %120 = vmatpush2.msra.mxu0 0.0
    %121 = vmatprep.subr.mxu0 0.0
    %122 = vmatpush2.msra.mxu0 0.0
    %123 = vmatprep.subr.mxu0 0.0
    %124 = vmatpush2.msra.mxu0 0.0
    %125 = vmatprep.subr.mxu0 0.0
    %126 = vmatpush2.msra.mxu0 0.0
    %127 = vmatprep.subr.mxu0 0.0
    %128 = vmatpush2.msra.mxu0 0.0
    %129 = vmatprep.mubr.f32.mxu0 0.0
    %130 = vmatmul.mubr.f32.gmra.mxu0 %v41
    %v131 = vpop.f32.mrf.mxu0
    %v132 = vadd.f32 %v63, %v131
    %v133 = vpop.f32.mrf.mxu0
    %134 = vdwg.mxu0
    %135 = vst [vmem:[#allocation7] sm:$0xff] %v132
    // Predicated region
    $region22: #{tpu_custom_call.1} parent=1 // pred_check
      _
    $region23: #{tpu_custom_call.1} parent=1 // pred_check_branch
      %137 = sbr.rel (0) target = $region25
    $region24: #{tpu_custom_call.1} parent=1 // pred_region
      %s139 = ssub.s32 128, 128
      %140 = vsyncadd [#allocation4], %s139
      %s142 = sshll.u32 [#allocation7], 4
      %s143 = int_to_ptr.vmem [resolvable:$true] %s142
      %145 = dma.vmem_to_hbm [thread:$0]  %s143, 128, %s3, [#allocation4]
    $region25: #{tpu_custom_call.1} parent=1 // pred_fallthru
      _
    // Predicated region
    $region26: #{tpu_custom_call.1} parent=1 // pred_check
      _
    $region27: #{tpu_custom_call.1} parent=1 // pred_check_branch
      %147 = sbr.rel (0) target = $region29
    $region28: #{tpu_custom_call.1} parent=1 // pred_region
      %148 = dma.done [#allocation4], 128
    $region29: #{tpu_custom_call.1} parent=1 // pred_fallthru
      _
    %149 = vsyncpa [#allocation3], 1
    %150 = vsyncpa [#allocation6], 1
    %151 = vsyncpa [#allocation4], 1

</llo_original>
